<compile_context>
chip_gen: v7x
topology: tpu7x:2x2x1
jax: 0.10.0
libtpu: 0.0.40
codegen_flags: <defaults>
</compile_context>

<pallas_src>
import jax
import jax.numpy as jnp
from jax.experimental import pallas as pl
from jax.experimental.pallas import tpu as pltpu


_LANE = 128
_TARGET_BLOCK_BYTES = 2 << 20   # ~2 MiB input-block cap
_MIN_BLOCK_BYTES = 256 << 10    # don't shrink below ~256 KiB just to add steps
_MIN_GRID_STEPS = 8             # >= 4 steps per TensorCore after v7x parallel split


def _cdiv(a, b):
    return -(-a // b)


def _round_up(a, b):
    return _cdiv(a, b) * b


def _sigmoid_kernel(x_ref, o_ref):
    # Compute in f32 (exp/tanh go to the EUP slot, rest to the VPU); cast on
    # store so HBM traffic stays at the narrow dtype for bf16/fp16 inputs.
    x = x_ref[...].astype(jnp.float32)
    if o_ref.dtype == jnp.float32:
        # Exact formulation for f32 callers expecting <=1e-6 agreement.
        y = 1.0 / (1.0 + jnp.exp(-x))
    else:
        # Mathematically identical, but a shorter VALU chain (no divide /
        # Newton refinement) — keeps the bf16 path cleanly DMA-bound on v7x.
        y = 0.5 * jnp.tanh(0.5 * x) + 0.5
    o_ref[...] = y.astype(o_ref.dtype)


def _sigmoid_jnp(x):
    # Mirrors the PyTorch module exactly: 1 / (1 + exp(-x)), f32 intermediate.
    return (1.0 / (1.0 + jnp.exp(-x.astype(jnp.float32)))).astype(x.dtype)


def _sigmoid_lane_aligned(flat):
    """Run the Pallas kernel over a lane-aligned (n % 128 == 0) flat array."""
    n = flat.shape[0]
    dtype = flat.dtype
    itemsize = jnp.dtype(dtype).itemsize
    # Sublane granularity: 8 for 32-bit, 16 for 16-bit, 32 for 8-bit dtypes.
    sub = max(8, 32 // max(1, itemsize))

    rows = n // _LANE
    slab = flat.reshape(rows, _LANE)   # lane-dense, no padding needed

    bytes_per_row = _LANE * itemsize
    cap_rows = max(sub, (_TARGET_BLOCK_BYTES // bytes_per_row) // sub * sub)
    floor_rows = max(sub, (_MIN_BLOCK_BYTES // bytes_per_row) // sub * sub)

    if rows <= floor_rows:
        # Single full-extent block (legal block shape even if rows % sub != 0).
        block_rows = rows
    else:
        # Prefer >= _MIN_GRID_STEPS pipeline steps, but keep each block
        # between ~256 KiB and ~2 MiB of the input dtype.
        rows_for_steps = _round_up(_cdiv(rows, _MIN_GRID_STEPS), sub)
        block_rows = min(cap_rows, max(floor_rows, rows_for_steps))
    grid = (_cdiv(rows, block_rows),)   # partial edge block is masked by Pallas

    cost = pl.CostEstimate(
        flops=3 * n, transcendentals=n, bytes_accessed=2 * n * itemsize
    )

    out = pl.pallas_call(
        _sigmoid_kernel,
        out_shape=jax.ShapeDtypeStruct((rows, _LANE), dtype),
        grid_spec=pltpu.PrefetchScalarGridSpec(
            num_scalar_prefetch=0,
            grid=grid,
            in_specs=[pl.BlockSpec((block_rows, _LANE), lambda i: (i, 0))],
            out_specs=pl.BlockSpec((block_rows, _LANE), lambda i: (i, 0)),
        ),
        compiler_params=pltpu.CompilerParams(
            dimension_semantics=("parallel",),
        ),
        cost_estimate=cost,
    )(slab)
    return out.reshape(-1)


def sigmoid_pallas(x, *, min_pallas_elems=65536):
    """Elementwise sigmoid, preserving shape/dtype (forward of torchact Sigmoid)."""
    orig_shape = x.shape
    n = x.size
    if n == 0:
        return x
    if n < min_pallas_elems:
        # Tiny activations: pallas_call launch + prologue/epilogue DMA cost
        # dominates; the XLA-fused elementwise op is strictly faster here.
        return _sigmoid_jnp(x)

    flat = x.reshape(-1)
    n_aligned = (n // _LANE) * _LANE

    if n_aligned == n:
        out_flat = _sigmoid_lane_aligned(flat)
    elif n_aligned == 0:
        out_flat = _sigmoid_jnp(flat)
    else:
        # Ragged tail (< 128 elems): aligned prefix through the kernel, tiny
        # jnp op for the tail. No full-array pad / output slice copies.
        head_out = _sigmoid_lane_aligned(flat[:n_aligned])
        tail_out = _sigmoid_jnp(flat[n_aligned:])
        out_flat = jnp.concatenate([head_out, tail_out])

    return out_flat.reshape(orig_shape)


if __name__ == "__main__":
    key = jax.random.PRNGKey(0)
    # Small NCHW-like input consistent with typical activation-module usage.
    x = jax.random.normal(key, (2, 4, 16, 16), dtype=jnp.float32)

    # Force the Pallas path at this small test size (the default threshold
    # would take the jnp fallback below ~64K elements).
    y = jax.block_until_ready(sigmoid_pallas(x, min_pallas_elems=0))
    y_ref = 1.0 / (1.0 + jnp.exp(-x))
    assert y.shape == x.shape and y.dtype == x.dtype
    assert jnp.allclose(y, y_ref, atol=1e-6, rtol=1e-6)

    # Doc example (exercises the small-input fallback path):
    # sigmoid([1, -2, 0, 3]) ≈ [0.7311, 0.1192, 0.5, 0.9526]
    v = jnp.array([1.0, -2.0, 0.0, 3.0], dtype=jnp.float32)
    yv = jax.block_until_ready(sigmoid_pallas(v))
    assert jnp.allclose(
        yv, jnp.array([0.7310586, 0.11920292, 0.5, 0.95257413]), atol=1e-4
    )

    # Ragged (n % 128 != 0) Pallas path: aligned prefix + tiny jnp tail.
    w = jax.random.normal(jax.random.PRNGKey(1), (1000,), dtype=jnp.float32)
    yw = jax.block_until_ready(sigmoid_pallas(w, min_pallas_elems=0))
    assert jnp.allclose(yw, 1.0 / (1.0 + jnp.exp(-w)), atol=1e-6, rtol=1e-6)

    # Narrow-dtype path (bf16): compute in f32 inside the kernel, store bf16.
    xb = x.astype(jnp.bfloat16)
    yb = jax.block_until_ready(sigmoid_pallas(xb, min_pallas_elems=0))
    yb_ref = (1.0 / (1.0 + jnp.exp(-xb.astype(jnp.float32)))).astype(jnp.bfloat16)
    assert yb.dtype == jnp.bfloat16
    assert jnp.allclose(
        yb.astype(jnp.float32), yb_ref.astype(jnp.float32), atol=1e-2
    )

    print("KERNEL_OK")
</pallas_src>

<mosaic_0001>
module attributes {stable_mosaic.version = 11 : i64} {
  func.func @_sigmoid_kernel(%arg0: i32, %arg1: memref<16x128xf32, #tpu.memory_space<vmem>>, %arg2: memref<16x128xf32, #tpu.memory_space<vmem>>) attributes {dimension_semantics = [#tpu.dimension_semantics<parallel>], iteration_bounds = array<i64: 1>, scalar_prefetch = 0 : i64, scratch_operands = 0 : i64, tpu.core_type = #tpu.core_type<tc>, window_params = [{transform_indices = @transform_0, window_bounds = array<i64: 16, 128>}, {transform_indices = @transform_1, window_bounds = array<i64: 16, 128>}]} {
    %c0 = arith.constant 0 : index
    %c0_0 = arith.constant 0 : index
    %0 = vector.load %arg1[%c0, %c0_0] : memref<16x128xf32, #tpu.memory_space<vmem>>, vector<16x128xf32>
    %cst = arith.constant 0.000000e+00 : f32
    %1 = vector.broadcast %cst : f32 to vector<16x128xf32>
    %2 = arith.subf %1, %0 : vector<16x128xf32>
    %3 = math.exp %2 : vector<16x128xf32>
    %cst_1 = arith.constant 1.000000e+00 : f32
    %4 = vector.broadcast %cst_1 : f32 to vector<16x128xf32>
    %5 = arith.addf %4, %3 : vector<16x128xf32>
    %cst_2 = arith.constant 1.000000e+00 : f32
    %6 = vector.broadcast %cst_2 : f32 to vector<16x128xf32>
    %7 = arith.divf %6, %5 : vector<16x128xf32>
    %c0_3 = arith.constant 0 : index
    %c0_4 = arith.constant 0 : index
    %8 = vector.load %arg2[%c0_3, %c0_4] : memref<16x128xf32, #tpu.memory_space<vmem>>, vector<16x128xf32>
    tpu.vector_store %arg2[%c0_3, %c0_4], %7 {strides = array<i32>} : memref<16x128xf32, #tpu.memory_space<vmem>>, vector<16x128xf32>,
    return
  }
  func.func @transform_0(%arg0: i32) -> (i32, i32) {
    %c0_i32 = arith.constant 0 : i32
    %c0_i32_0 = arith.constant 0 : i32
    return %arg0, %c0_i32 : i32, i32
  }
  func.func @transform_1(%arg0: i32) -> (i32, i32) {
    %c0_i32 = arith.constant 0 : i32
    %c0_i32_0 = arith.constant 0 : i32
    return %arg0, %c0_i32 : i32, i32
  }
}

</mosaic_0001>

<llo_original>
// kernel: tpu_custom_call.1
$region0: #{tpu_custom_call.1}
  #allocation0 [shape = 'u32[]', space=smem, size = 0x4, offset = 0x4, fixed_abs, tag = 'smem constant byte address 0x4 - core index']
  #allocation1 [shape = 'u32[144,128]{1,0:T(1,128)}', space=vmem, size = 0x12000, scoped, tag = 'internal scratch']
  %s0 = inlined_call_operand.hbm [shape: f32[16,128], index: 0, kind: input, shape index: {}]
  %s1 = inlined_call_operand.hbm [shape: f32[16,128], index: 1, kind: output, shape index: {}]
  %s2 = sld [smem:[#allocation0]]
  $region18: #{tpu_custom_call.1} parent=0
    _
  %s4 = ssub.s32 1, %s2
  %s5 = scalar_select 0, %s4, %s2
  $region1: #{tpu_custom_call.1} parent=0
    #allocation2 [shape = 'u8[8192]{0}', space=vmem, size = 0x2000, scoped, tag = 'input window, operand 0, single buffered']
    #allocation3 [shape = 's32[1]{0}', space=sflag, size = 0x4, scoped, tag = 'scoped memory for tpu_custom_call.1']
    #allocation4 [shape = 's32[1]{0}', space=sflag, size = 0x4, scoped, tag = 'scoped memory for tpu_custom_call.1']
    #allocation5 [shape = 'u8[8192]{0}', space=vmem, size = 0x2000, scoped, tag = 'output window, operand 0, single buffered']
    %6 = vsyncpa [#allocation3], 0
    %7 = vsyncpa [#allocation4], 0
    // Predicated region
    $region2: #{tpu_custom_call.1} parent=1 // pred_check
      _
    $region3: #{tpu_custom_call.1} parent=1 // pred_check_branch
      %9 = sbr.rel (0) target = $region5
    $region4: #{tpu_custom_call.1} parent=1 // pred_region
      %s11 = ssub.s32 256, 256
      %12 = vsyncadd [#allocation3], %s11
      %s13 = sshll.u32 [#allocation2], 4
      %s14 = int_to_ptr.vmem [resolvable:$true] %s13
      %19 = dma.hbm_to_vmem [thread:$0]  %s0, 256, %s14, [#allocation3], 128, 128, 8
    $region5: #{tpu_custom_call.1} parent=1 // pred_fallthru
      _
    // Predicated region
    $region6: #{tpu_custom_call.1} parent=1 // pred_check
      _
    $region7: #{tpu_custom_call.1} parent=1 // pred_check_branch
      %21 = sbr.rel (0) target = $region9
    $region8: #{tpu_custom_call.1} parent=1 // pred_region
      %22 = dma.done [#allocation3], 256
    $region9: #{tpu_custom_call.1} parent=1 // pred_fallthru
      _
    %v23 = vld [vmem:[#allocation2] sm:$0xff]
    %v24 = vld [vmem:[#allocation2 + $0x8] sm:$0xff]
    %v25 = vsub.f32 0.0, %v23
    %v26 = vsub.f32 0.0, %v24
    %v27 = vmul.f32 %v25, 1.442695
    %v28 = vpow.pop %v27
    %v29 = vmul.f32 %v26, 1.442695
    %v30 = vpow.pop %v29
    %v31 = vadd.f32 %v28, 1.0
    %v32 = vadd.f32 %v30, 1.0
    %v33 = vrcp.pop %v31
    %v34 = vmul.f32 1.0, %v33
    %v35 = vrcp.pop %v32
    %v36 = vmul.f32 1.0, %v35
    %37 = vst [vmem:[#allocation5] sm:$0xff] %v34
    %38 = vst [vmem:[#allocation5 + $0x8] sm:$0xff] %v36
    // Predicated region
    $region10: #{tpu_custom_call.1} parent=1 // pred_check
      _
    $region11: #{tpu_custom_call.1} parent=1 // pred_check_branch
      %40 = sbr.rel (0) target = $region13
    $region12: #{tpu_custom_call.1} parent=1 // pred_region
      %s42 = ssub.s32 256, 256
      %43 = vsyncadd [#allocation4], %s42
      %s44 = sshll.u32 [#allocation5], 4
      %s45 = int_to_ptr.vmem [resolvable:$true] %s44
      %50 = dma.vmem_to_hbm [thread:$0]  %s45, 256, %s1, [#allocation4], 128, 128, 8
    $region13: #{tpu_custom_call.1} parent=1 // pred_fallthru
      _
    // Predicated region
    $region14: #{tpu_custom_call.1} parent=1 // pred_check
      _
    $region15: #{tpu_custom_call.1} parent=1 // pred_check_branch
      %52 = sbr.rel (0) target = $region17
    $region16: #{tpu_custom_call.1} parent=1 // pred_region
      %53 = dma.done [#allocation4], 256
    $region17: #{tpu_custom_call.1} parent=1 // pred_fallthru
      _
    %54 = vsyncpa [#allocation3], 1
    %55 = vsyncpa [#allocation4], 1

</llo_original>
